<compile_context>
chip_gen: v6e
topology: v6e:2x2x1
jax: 0.10.0
libtpu: 0.0.40
codegen_flags: <defaults>
</compile_context>

<pallas_src>
import math

import jax
import jax.numpy as jnp
from jax.experimental import pallas as pl
from jax.experimental.pallas import tpu as pltpu


_LANES = 128
_LANE_CAP = 4096                 # max last-dim width presented to the kernel
_KERNEL_MIN_BYTES = 1 << 20      # below this the kernel launch is pure overhead


def _identity_kernel(x_ref, o_ref):
    # Full-tile elementwise pass (identity copy).
    o_ref[...] = x_ref[...]


def _sublane_multiple(dtype):
    itemsize = jnp.dtype(dtype).itemsize
    # 32-bit -> 8, 16-bit -> 16, 8-bit -> 32.  Unknown itemsizes fall back to 8,
    # which is safe here: tiles are either sublane-multiples or full-extent.
    return {4: 8, 2: 16, 1: 32}.get(itemsize, 8)


def _choose_lane_width(total):
    """Largest multiple of 128 that divides `total`, capped at _LANE_CAP."""
    cap = min(_LANE_CAP, total)
    cap = (cap // _LANES) * _LANES
    for c in range(cap, _LANES - 1, -_LANES):
        if total % c == 0:
            return c
    return _LANES


def _block_bytes_and_vmem_limit():
    """Generation-aware block sizing.

    Target ~1/8 of physical VMEM per block (clamped to [2 MiB, 8 MiB]) and
    request an explicit scoped-VMEM limit so 2x(in+out) double-buffering fits
    with headroom on every chip generation (v5e/v6e: 128 MiB physical,
    v7x: 64 MiB physical; scoped defaults are only 16/32/32 MiB).
    """
    try:
        vmem = int(pltpu.get_tpu_info().vmem_capacity_bytes)
    except Exception:
        vmem = 64 << 20  # conservative fallback (v7x per-TC physical size)
    blk = max(2 << 20, min(8 << 20, vmem // 8))
    limit = int(min(3 * vmem // 4, 4 * blk + (8 << 20)))
    return blk, limit


def _round_up(v, m):
    return ((v + m - 1) // m) * m


def holodeck_forward(x, *, force_kernel=False):
    """Holodeck.forward(x) == x.

    The identity requires zero data movement, so by default we return `x`
    directly whenever launching a kernel would be pure overhead (small
    tensors) or would require extra HBM passes (lane-misaligned sizes).
    For large 128-aligned tensors (or with force_kernel=True) we run a
    tiled, software-pipelined streaming copy at the 1-read + 1-write roofline.
    """
    orig_shape = x.shape
    dtype = x.dtype
    total = math.prod(orig_shape) if orig_shape else 1
    itemsize = jnp.dtype(dtype).itemsize

    if total == 0:
        return x

    # Fast path: identity needs no data movement at all.
    if not force_kernel and total * itemsize < _KERNEL_MIN_BYTES:
        return x

    # Lane-misaligned totals would need a pad + trailing slice (~3x HBM
    # traffic); the zero-copy identity is strictly better, so take it.
    if total % _LANES != 0:
        return x

    sub = _sublane_multiple(dtype)

    # Lane-dense 2D view (R, C): no pad, wide unmasked stores.
    C = _choose_lane_width(total)
    R = total // C
    x2d = x.reshape(R, C)

    # Row-tile targeting the generation-appropriate block size.
    block_bytes, vmem_limit = _block_bytes_and_vmem_limit()
    row_bytes = C * itemsize
    tile_r = max(sub, (block_bytes // max(row_bytes, 1)) // sub * sub)
    if tile_r >= R:
        tile_r = R  # full-extent row block: always layout-legal
    grid_r = -(-R // tile_r)

    # v7x megacore: give the "parallel" axis >= 2 (preferably even) blocks so
    # both TensorCores participate.  Only when a sublane-aligned split exists.
    if R >= 2 * sub:
        if grid_r == 1:
            tile_r = max(sub, _round_up(-(-R // 2), sub))
            grid_r = -(-R // tile_r)
        elif grid_r % 2 == 1:
            t = max(sub, _round_up(-(-R // (grid_r + 1)), sub))
            g = -(-R // t)
            if g % 2 == 0:
                tile_r, grid_r = t, g

    out2d = pl.pallas_call(
        _identity_kernel,
        out_shape=jax.ShapeDtypeStruct((R, C), dtype),
        grid_spec=pltpu.PrefetchScalarGridSpec(
            num_scalar_prefetch=0,
            grid=(grid_r,),
            in_specs=[pl.BlockSpec((tile_r, C), lambda i: (i, 0))],
            out_specs=pl.BlockSpec((tile_r, C), lambda i: (i, 0)),
        ),
        compiler_params=pltpu.CompilerParams(
            dimension_semantics=("parallel",),
            vmem_limit_bytes=vmem_limit,
        ),
        cost_estimate=pl.CostEstimate(
            flops=0,
            transcendentals=0,
            bytes_accessed=2 * total * itemsize,
        ),
    )(x2d)

    return out2d.reshape(orig_shape)


if __name__ == "__main__":
    key = jax.random.PRNGKey(0)
    # Small NCHW input consistent with an image-style module.
    x = jax.random.normal(key, (2, 4, 16, 16), dtype=jnp.float32)

    # Default path: identity short-circuit (zero data movement).
    y_fast = holodeck_forward(x)
    # Kernel path: run the streaming-copy kernel once and verify it too.
    y_kernel = holodeck_forward(x, force_kernel=True)
    y_fast, y_kernel = jax.block_until_ready((y_fast, y_kernel))

    # Identity check against the reference semantics.
    assert y_fast.shape == x.shape and y_fast.dtype == x.dtype
    assert y_kernel.shape == x.shape and y_kernel.dtype == x.dtype
    assert bool(jnp.all(y_fast == x))
    assert bool(jnp.all(y_kernel == x))

    print("KERNEL_OK")
</pallas_src>

<mosaic_0001>
module attributes {stable_mosaic.version = 11 : i64} {
  func.func @_identity_kernel(%arg0: i32, %arg1: memref<1x2048xf32, #tpu.memory_space<vmem>>, %arg2: memref<1x2048xf32, #tpu.memory_space<vmem>>) attributes {dimension_semantics = [#tpu.dimension_semantics<parallel>], iteration_bounds = array<i64: 1>, scalar_prefetch = 0 : i64, scratch_operands = 0 : i64, tpu.core_type = #tpu.core_type<tc>, window_params = [{transform_indices = @transform_0, window_bounds = array<i64: 1, 2048>}, {transform_indices = @transform_1, window_bounds = array<i64: 1, 2048>}]} {
    %c0 = arith.constant 0 : index
    %c0_0 = arith.constant 0 : index
    %0 = vector.load %arg1[%c0, %c0_0] : memref<1x2048xf32, #tpu.memory_space<vmem>>, vector<1x2048xf32>
    %c0_1 = arith.constant 0 : index
    %c0_2 = arith.constant 0 : index
    %1 = vector.load %arg2[%c0_1, %c0_2] : memref<1x2048xf32, #tpu.memory_space<vmem>>, vector<1x2048xf32>
    tpu.vector_store %arg2[%c0_1, %c0_2], %0 {strides = array<i32>} : memref<1x2048xf32, #tpu.memory_space<vmem>>, vector<1x2048xf32>,
    return
  }
  func.func @transform_0(%arg0: i32) -> (i32, i32) {
    %c0_i32 = arith.constant 0 : i32
    %c0_i32_0 = arith.constant 0 : i32
    return %arg0, %c0_i32 : i32, i32
  }
  func.func @transform_1(%arg0: i32) -> (i32, i32) {
    %c0_i32 = arith.constant 0 : i32
    %c0_i32_0 = arith.constant 0 : i32
    return %arg0, %c0_i32 : i32, i32
  }
}

</mosaic_0001>

<llo_original>
// kernel: tpu_custom_call.1
$region0: #{tpu_custom_call.1}
  #allocation0 [shape = 'u32[]', space=smem, size = 0x4, offset = 0x4, fixed_abs, tag = 'smem constant byte address 0x4 - core index']
  #allocation1 [shape = 'u32[144,128]{1,0:T(1,128)}', space=vmem, size = 0x12000, scoped, tag = 'internal scratch']
  %s0 = inlined_call_operand.hbm [shape: f32[1,2048], index: 0, kind: input, shape index: {}]
  %s1 = inlined_call_operand.hbm [shape: f32[1,2048], index: 1, kind: output, shape index: {}]
  %s2 = sld [smem:[#allocation0]]
  $region18: #{tpu_custom_call.1} parent=0
    _
  %s4 = ssub.s32 1, %s2
  %s5 = scalar_select 0, %s4, %s2
  $region1: #{tpu_custom_call.1} parent=0
    #allocation2 [shape = 'u8[8192]{0}', space=vmem, size = 0x2000, scoped, tag = 'input window, operand 0, single buffered']
    #allocation3 [shape = 's32[1]{0}', space=sflag, size = 0x4, scoped, tag = 'scoped memory for tpu_custom_call.1']
    #allocation4 [shape = 's32[1]{0}', space=sflag, size = 0x4, scoped, tag = 'scoped memory for tpu_custom_call.1']
    #allocation5 [shape = 'u8[8192]{0}', space=vmem, size = 0x2000, scoped, tag = 'output window, operand 0, single buffered']
    %6 = vsyncpa [#allocation3], 0
    %7 = vsyncpa [#allocation4], 0
    // Predicated region
    $region2: #{tpu_custom_call.1} parent=1 // pred_check
      _
    $region3: #{tpu_custom_call.1} parent=1 // pred_check_branch
      %9 = sbr.rel (0) target = $region5
    $region4: #{tpu_custom_call.1} parent=1 // pred_region
      %s11 = ssub.s32 256, 256
      %12 = vsyncadd [#allocation3], %s11
      %s14 = sshll.u32 [#allocation2], 4
      %s15 = int_to_ptr.vmem [resolvable:$true] %s14
      %17 = dma.hbm_to_vmem [thread:$0]  %s0, 256, %s15, [#allocation3]
    $region5: #{tpu_custom_call.1} parent=1 // pred_fallthru
      _
    // Predicated region
    $region6: #{tpu_custom_call.1} parent=1 // pred_check
      _
    $region7: #{tpu_custom_call.1} parent=1 // pred_check_branch
      %19 = sbr.rel (0) target = $region9
    $region8: #{tpu_custom_call.1} parent=1 // pred_region
      %20 = dma.done [#allocation3], 256
    $region9: #{tpu_custom_call.1} parent=1 // pred_fallthru
      _
    %v21 = vld [vmem:[#allocation2] sm:$0xff]
    %v22 = vld [vmem:[#allocation2 + $0x8] sm:$0xff]
    %23 = vst [vmem:[#allocation5] sm:$0xff] %v21
    %24 = vst [vmem:[#allocation5 + $0x8] sm:$0xff] %v22
    // Predicated region
    $region10: #{tpu_custom_call.1} parent=1 // pred_check
      _
    $region11: #{tpu_custom_call.1} parent=1 // pred_check_branch
      %26 = sbr.rel (0) target = $region13
    $region12: #{tpu_custom_call.1} parent=1 // pred_region
      %s28 = ssub.s32 256, 256
      %29 = vsyncadd [#allocation4], %s28
      %s31 = sshll.u32 [#allocation5], 4
      %s32 = int_to_ptr.vmem [resolvable:$true] %s31
      %34 = dma.vmem_to_hbm [thread:$0]  %s32, 256, %s1, [#allocation4]
    $region13: #{tpu_custom_call.1} parent=1 // pred_fallthru
      _
    // Predicated region
    $region14: #{tpu_custom_call.1} parent=1 // pred_check
      _
    $region15: #{tpu_custom_call.1} parent=1 // pred_check_branch
      %36 = sbr.rel (0) target = $region17
    $region16: #{tpu_custom_call.1} parent=1 // pred_region
      %37 = dma.done [#allocation4], 256
    $region17: #{tpu_custom_call.1} parent=1 // pred_fallthru
      _
    %38 = vsyncpa [#allocation3], 1
    %39 = vsyncpa [#allocation4], 1

</llo_original>
